<compile_context>
chip_gen: v7x
topology: tpu7x:2x2x1
jax: 0.10.0
libtpu: 0.0.40
codegen_flags: <defaults>
</compile_context>

<pallas_src>
import jax
import jax.numpy as jnp
from jax import lax
from jax.experimental import pallas as pl
from jax.experimental.pallas import tpu as pltpu


def _round_up(x: int, m: int) -> int:
    return ((x + m - 1) // m) * m


def _pad2(a, rows: int, cols: int):
    pr, pc = rows - a.shape[0], cols - a.shape[1]
    if pr or pc:
        a = jnp.pad(a, ((0, pr), (0, pc)))
    return a


# --------------------------------------------------------------------------
# Small-shape path: everything fits in VMEM -> single shot, f32, no padding.
# --------------------------------------------------------------------------
def _linear_small_kernel(x_ref, w_ref, b_ref, o_ref):
    # x: [B, F] f32, w: [A, F] f32 (PyTorch layout, contracted directly),
    # b: [1, A] f32, o: [B, A].
    o_ref[...] = (
        lax.dot_general(
            x_ref[...],
            w_ref[...],
            dimension_numbers=(((1,), (1,)), ((), ())),  # x @ w^T, no transpose op
            preferred_element_type=jnp.float32,
        )
        + b_ref[...]
    ).astype(o_ref.dtype)


# --------------------------------------------------------------------------
# Large-shape path: tiled bf16-MXU / f32-accumulate kernel.
# --------------------------------------------------------------------------
def _linear_tiled_kernel(x_ref, wt_ref, b_ref, o_ref, acc_ref):
    # x:  [tm, tk] f32   (cast to MXU dtype in-kernel)
    # wt: [tk, tn]       (pre-transposed [F, A] parameter, MXU dtype)
    # b:  [1, tn]  f32
    # o:  [tm, tn]
    # acc:[tm, tn] f32 scratch
    k = pl.program_id(2)

    @pl.when(k == 0)
    def _():
        # Bias-initialized accumulator: removes the epilogue full-tile add.
        acc_ref[...] = jnp.broadcast_to(b_ref[...], acc_ref.shape)

    acc_ref[...] += jnp.dot(
        x_ref[...].astype(wt_ref.dtype),
        wt_ref[...],
        preferred_element_type=jnp.float32,
    )

    @pl.when(k == pl.num_programs(2) - 1)
    def _():
        o_ref[...] = acc_ref[...].astype(o_ref.dtype)


def res_policy_head(x, weight, bias, *,
                    block_b=256, block_a=256, block_f=1024,
                    mxu_dtype=jnp.bfloat16):
    """Pallas equivalent of Res_PolicyHead.forward.

    x:      [B, feature_dim]
    weight: [n_actions, feature_dim]   (PyTorch nn.Linear layout)
    bias:   [n_actions]
    returns [B, n_actions] in x.dtype
    """
    B, F = x.shape
    A, F2 = weight.shape
    assert F == F2, "feature_dim mismatch"
    out_dtype = x.dtype

    bias2d = bias.astype(jnp.float32).reshape(1, A)  # tiny parameter prep

    # ---------------- single-shot path (module's real shapes) ----------------
    if B <= block_b and A <= block_a and F <= block_f:
        return pl.pallas_call(
            _linear_small_kernel,
            out_shape=jax.ShapeDtypeStruct((B, A), out_dtype),
        )(x, weight, bias2d)

    # ---------------------------- tiled path --------------------------------
    # Tile sizes: full-extent block on any axis that already fits (no padding),
    # otherwise the MXU-friendly block size.
    tm = B if B <= block_b else block_b          # block_b multiple of 16
    tn = A if A <= block_a else block_a          # block_a multiple of 128
    tk = F if F <= block_f else block_f          # block_f multiple of 256

    B_pad = B if B <= block_b else _round_up(B, tm)
    A_pad = A if A <= block_a else _round_up(A, tn)
    F_pad = F if F <= block_f else _round_up(F, tk)

    # One-time parameter prep (constant-foldable for fixed weights): transpose
    # to [F, A] so the contraction needs no per-K-step XLU transpose, cast to
    # the MXU feed dtype, zero-pad to tile multiples.
    wt = _pad2(weight.T.astype(mxu_dtype), F_pad, A_pad)
    b_p = _pad2(bias2d, 1, A_pad)

    # Activation: keep f32 in HBM (cast in-kernel); pad only if required.
    x_p = _pad2(x, B_pad, F_pad)

    grid = (B_pad // tm, A_pad // tn, F_pad // tk)

    out_padded = pl.pallas_call(
        _linear_tiled_kernel,
        out_shape=jax.ShapeDtypeStruct((B_pad, A_pad), out_dtype),
        grid_spec=pltpu.PrefetchScalarGridSpec(
            num_scalar_prefetch=0,
            grid=grid,
            in_specs=[
                pl.BlockSpec((tm, tk), lambda i, j, k: (i, k)),   # x  [B, F]
                pl.BlockSpec((tk, tn), lambda i, j, k: (k, j)),   # Wt [F, A]
                pl.BlockSpec((1, tn), lambda i, j, k: (0, j)),    # bias
            ],
            out_specs=pl.BlockSpec((tm, tn), lambda i, j, k: (i, j)),
            scratch_shapes=[pltpu.VMEM((tm, tn), jnp.float32)],
        ),
        compiler_params=pltpu.CompilerParams(
            dimension_semantics=("parallel", "parallel", "arbitrary"),
            # Tiles here use ~4 MiB double-buffered; 48 MiB leaves headroom on
            # v7x (64 MiB physical) and is well under v5e/v6e's 128 MiB.
            vmem_limit_bytes=48 * 1024 * 1024,
        ),
    )(x_p, wt, b_p)

    if B_pad != B or A_pad != A:
        out_padded = out_padded[:B, :A]
    return out_padded


if __name__ == "__main__":
    key = jax.random.PRNGKey(0)
    k_x, k_w, k_b, k_x2, k_w2, k_b2 = jax.random.split(key, 6)

    # ---- Module's real shapes: batch=8, feature_dim=32, n_actions=16 --------
    B, FEATURE_DIM, N_ACTIONS = 8, 32, 16
    bound = 1.0 / (FEATURE_DIM ** 0.5)
    x = jax.random.normal(k_x, (B, FEATURE_DIM), dtype=jnp.float32)
    weight = jax.random.uniform(
        k_w, (N_ACTIONS, FEATURE_DIM), minval=-bound, maxval=bound, dtype=jnp.float32
    )
    bias = jax.random.uniform(
        k_b, (N_ACTIONS,), minval=-bound, maxval=bound, dtype=jnp.float32
    )

    out = jax.block_until_ready(res_policy_head(x, weight, bias))
    assert out.shape == (B, N_ACTIONS)
    ref_f32 = x @ weight.T + bias
    assert jnp.allclose(out, ref_f32, atol=2e-3, rtol=2e-3), \
        "small-path mismatch vs f32 reference"

    # ---- Tiled-path sanity check (forced via small block sizes) -------------
    B2, F2_, A2 = 256, 384, 192
    x2 = jax.random.normal(k_x2, (B2, F2_), dtype=jnp.float32)
    w2 = jax.random.normal(k_w2, (A2, F2_), dtype=jnp.float32) * 0.05
    b2 = jax.random.normal(k_b2, (A2,), dtype=jnp.float32) * 0.05

    out2 = jax.block_until_ready(
        res_policy_head(x2, w2, b2, block_b=128, block_a=128, block_f=128)
    )
    assert out2.shape == (B2, A2)
    # Reference at the kernel's precision (bf16 operands, f32 accumulate).
    xb = x2.astype(jnp.bfloat16).astype(jnp.float32)
    wb = w2.astype(jnp.bfloat16).astype(jnp.float32)
    ref2 = xb @ wb.T + b2
    assert jnp.allclose(out2, ref2, atol=1e-2, rtol=1e-2), \
        "tiled-path mismatch vs bf16-precision reference"
    assert jnp.allclose(out2, x2 @ w2.T + b2, atol=2e-1, rtol=5e-2), \
        "tiled-path mismatch vs f32 reference"

    print("KERNEL_OK")
</pallas_src>

<mosaic_0001>
module attributes {stable_mosaic.version = 11 : i64} {
  func.func @_linear_small_kernel(%arg0: memref<8x32xf32, #tpu.memory_space<vmem>>, %arg1: memref<16x32xf32, #tpu.memory_space<vmem>>, %arg2: memref<1x16xf32, #tpu.memory_space<vmem>>, %arg3: memref<8x16xf32, #tpu.memory_space<vmem>>) attributes {dimension_semantics = [], scalar_prefetch = 0 : i64, scratch_operands = 0 : i64, tpu.core_type = #tpu.core_type<tc>} {
    %c0 = arith.constant 0 : index
    %c0_0 = arith.constant 0 : index
    %0 = vector.load %arg0[%c0, %c0_0] : memref<8x32xf32, #tpu.memory_space<vmem>>, vector<8x32xf32>
    %c0_1 = arith.constant 0 : index
    %c0_2 = arith.constant 0 : index
    %1 = vector.load %arg1[%c0_1, %c0_2] : memref<16x32xf32, #tpu.memory_space<vmem>>, vector<16x32xf32>
    %cst = arith.constant dense<0.000000e+00> : vector<8x16xf32>
    %2 = tpu.matmul %0, %1, %cst {dimension_numbers = #tpu.dot_dimension_numbers<[1], [1], [0], [0], [0, 0, 1, 0], [], []>} : vector<8x32xf32>, vector<16x32xf32>, vector<8x16xf32> -> vector<8x16xf32>
    %c0_3 = arith.constant 0 : index
    %c0_4 = arith.constant 0 : index
    %3 = vector.load %arg2[%c0_3, %c0_4] : memref<1x16xf32, #tpu.memory_space<vmem>>, vector<1x16xf32>
    %4 = vector.broadcast %3 : vector<1x16xf32> to vector<8x16xf32>
    %5 = arith.addf %2, %4 : vector<8x16xf32>
    %c0_5 = arith.constant 0 : index
    %c0_6 = arith.constant 0 : index
    %6 = vector.load %arg3[%c0_5, %c0_6] : memref<8x16xf32, #tpu.memory_space<vmem>>, vector<8x16xf32>
    tpu.vector_store %arg3[%c0_5, %c0_6], %5 {strides = array<i32>} : memref<8x16xf32, #tpu.memory_space<vmem>>, vector<8x16xf32>,
    return
  }
}

</mosaic_0001>

<llo_original>
// kernel: tpu_custom_call.1
$region0: #{tpu_custom_call.1}
  #allocation0 [shape = 'u32[]', space=smem, size = 0x4, offset = 0x4, fixed_abs, tag = 'smem constant byte address 0x4 - core index']
  #allocation1 [shape = 'u32[144,128]{1,0:T(1,128)}', space=vmem, size = 0x12000, scoped, tag = 'internal scratch']
  %s0 = inlined_call_operand.hbm [shape: f32[8,32], index: 0, kind: input, shape index: {}]
  %s1 = inlined_call_operand.hbm [shape: f32[16,32], index: 1, kind: input, shape index: {}]
  %s2 = inlined_call_operand.vmem [shape: f32[1,16], index: 2, kind: input, shape index: {}]
  %s3 = inlined_call_operand.hbm [shape: f32[8,16], index: 3, kind: output, shape index: {}]
  %s4 = sld [smem:[#allocation0]]
  $region30: #{tpu_custom_call.1} parent=0
    _
  %s6 = ssub.s32 1, %s4
  %s7 = scalar_select 0, %s6, %s4
  $region1: #{tpu_custom_call.1} parent=0
    #allocation2 [shape = 'u8[4096]{0}', space=vmem, size = 0x1000, scoped, tag = 'input window, operand 0, single buffered']
    #allocation3 [shape = 's32[1]{0}', space=sflag, size = 0x4, scoped, tag = 'scoped memory for tpu_custom_call.1']
    #allocation4 [shape = 's32[1]{0}', space=sflag, size = 0x4, scoped, tag = 'scoped memory for tpu_custom_call.1']
    #allocation5 [shape = 'u8[8192]{0}', space=vmem, size = 0x2000, scoped, tag = 'input window, operand 1, single buffered']
    #allocation6 [shape = 's32[1]{0}', space=sflag, size = 0x4, scoped, tag = 'scoped memory for tpu_custom_call.1']
    #allocation7 [shape = 'u8[4096]{0}', space=vmem, size = 0x1000, scoped, tag = 'output window, operand 0, single buffered']
    %8 = vsyncpa [#allocation3], 0
    %9 = vsyncpa [#allocation6], 0
    %10 = vsyncpa [#allocation4], 0
    // Predicated region
    $region2: #{tpu_custom_call.1} parent=1 // pred_check
      _
    $region3: #{tpu_custom_call.1} parent=1 // pred_check_branch
      %12 = sbr.rel (0) target = $region5
    $region4: #{tpu_custom_call.1} parent=1 // pred_region
      %s14 = ssub.s32 128, 128
      %15 = vsyncadd [#allocation3], %s14
      %s17 = sshll.u32 [#allocation2], 4
      %s18 = int_to_ptr.vmem [resolvable:$true] %s17
      %20 = dma.hbm_to_vmem [thread:$0]  %s0, 128, %s18, [#allocation3]
    $region5: #{tpu_custom_call.1} parent=1 // pred_fallthru
      _
    // Predicated region
    $region6: #{tpu_custom_call.1} parent=1 // pred_check
      _
    $region7: #{tpu_custom_call.1} parent=1 // pred_check_branch
      %22 = sbr.rel (0) target = $region9
    $region8: #{tpu_custom_call.1} parent=1 // pred_region
      %s24 = ssub.s32 256, 256
      %25 = vsyncadd [#allocation6], %s24
      %s26 = sshll.u32 [#allocation5], 4
      %s27 = int_to_ptr.vmem [resolvable:$true] %s26
      %32 = dma.hbm_to_vmem [thread:$0]  %s1, 256, %s27, [#allocation6], 128, 128, 8
    $region9: #{tpu_custom_call.1} parent=1 // pred_fallthru
      _
    // Predicated region
    $region10: #{tpu_custom_call.1} parent=1 // pred_check
      _
    $region11: #{tpu_custom_call.1} parent=1 // pred_check_branch
      %34 = sbr.rel (0) target = $region13
    $region12: #{tpu_custom_call.1} parent=1 // pred_region
      _
    $region13: #{tpu_custom_call.1} parent=1 // pred_fallthru
      _
    // Predicated region
    $region14: #{tpu_custom_call.1} parent=1 // pred_check
      _
    $region15: #{tpu_custom_call.1} parent=1 // pred_check_branch
      %36 = sbr.rel (0) target = $region17
    $region16: #{tpu_custom_call.1} parent=1 // pred_region
      %37 = dma.done [#allocation3], 128
    $region17: #{tpu_custom_call.1} parent=1 // pred_fallthru
      _
    // Predicated region
    $region18: #{tpu_custom_call.1} parent=1 // pred_check
      _
    $region19: #{tpu_custom_call.1} parent=1 // pred_check_branch
      %39 = sbr.rel (0) target = $region21
    $region20: #{tpu_custom_call.1} parent=1 // pred_region
      %40 = dma.done [#allocation6], 256
    $region21: #{tpu_custom_call.1} parent=1 // pred_fallthru
      _
    %v41 = vld [vmem:[#allocation2] sm:$0xff]
    %v42 = vld [vmem:[#allocation5] sm:$0xff]
    %v43 = vld [vmem:[#allocation5 + $0x8] sm:$0xff]
    %v44 = vld [vmem:[%s2] sm:$0x1]
    %v46 = vlaneseq
    %v47 = vshrl.u32 %v46, 7
    %v48 = vsub.s32 0, %v47
    %v49 = vrot.slane %v44, %v48
    %vm51 = vcmask 261120
    %v53 = vsel %vm51, %v41, 0
    %v56 = vsel %vm51, %v42, 0
    %v59 = vsel %vm51, %v43, 0
    %61 = vmatprep.subr.mxu0 0.0
    %62 = vmatpush1.xpose.msra.mxu0 %v56
    %63 = vmatprep.subr.mxu0 0.0
    %64 = vmatpush1.xpose.msra.mxu0 %v59
    %65 = vmatprep.subr.mxu0 0.0
    %66 = vmatpush1.xpose.msra.mxu0 0.0
    %67 = vmatprep.subr.mxu0 0.0
    %68 = vmatpush1.xpose.msra.mxu0 0.0
    %69 = vmatprep.subr.mxu0 0.0
    %70 = vmatpush1.xpose.msra.mxu0 0.0
    %71 = vmatprep.subr.mxu0 0.0
    %72 = vmatpush1.xpose.msra.mxu0 0.0
    %73 = vmatprep.subr.mxu0 0.0
    %74 = vmatpush1.xpose.msra.mxu0 0.0
    %75 = vmatprep.subr.mxu0 0.0
    %76 = vmatpush1.xpose.msra.mxu0 0.0
    %77 = vmatprep.subr.mxu0 0.0
    %78 = vmatpush1.xpose.msra.mxu0 0.0
    %79 = vmatprep.subr.mxu0 0.0
    %80 = vmatpush1.xpose.msra.mxu0 0.0
    %81 = vmatprep.subr.mxu0 0.0
    %82 = vmatpush1.xpose.msra.mxu0 0.0
    %83 = vmatprep.subr.mxu0 0.0
    %84 = vmatpush1.xpose.msra.mxu0 0.0
    %85 = vmatprep.subr.mxu0 0.0
    %86 = vmatpush1.xpose.msra.mxu0 0.0
    %87 = vmatprep.subr.mxu0 0.0
    %88 = vmatpush1.xpose.msra.mxu0 0.0
    %89 = vmatprep.subr.mxu0 0.0
    %90 = vmatpush1.xpose.msra.mxu0 0.0
    %91 = vmatprep.subr.mxu0 0.0
    %92 = vmatpush1.xpose.msra.mxu0 0.0
    %93 = vmatprep.subr.mxu0 0.0
    %94 = vmatpush1.xpose.msra.mxu0 0.0
    %95 = vmatprep.subr.mxu0 0.0
    %96 = vmatpush1.xpose.msra.mxu0 0.0
    %97 = vmatprep.subr.mxu0 0.0
    %98 = vmatpush1.xpose.msra.mxu0 0.0
    %99 = vmatprep.subr.mxu0 0.0
    %100 = vmatpush1.xpose.msra.mxu0 0.0
    %101 = vmatprep.subr.mxu0 0.0
    %102 = vmatpush1.xpose.msra.mxu0 0.0
    %103 = vmatprep.subr.mxu0 0.0
    %104 = vmatpush1.xpose.msra.mxu0 0.0
    %105 = vmatprep.subr.mxu0 0.0
    %106 = vmatpush1.xpose.msra.mxu0 0.0
    %107 = vmatprep.subr.mxu0 0.0
    %108 = vmatpush1.xpose.msra.mxu0 0.0
    %109 = vmatprep.subr.mxu0 0.0
    %110 = vmatpush1.xpose.msra.mxu0 0.0
    %111 = vmatprep.subr.mxu0 0.0
    %112 = vmatpush1.xpose.msra.mxu0 0.0
    %113 = vmatprep.subr.mxu0 0.0
    %114 = vmatpush1.xpose.msra.mxu0 0.0
    %115 = vmatprep.subr.mxu0 0.0
    %116 = vmatpush1.xpose.msra.mxu0 0.0
    %117 = vmatprep.subr.mxu0 0.0
    %118 = vmatpush1.xpose.msra.mxu0 0.0
    %119 = vmatprep.subr.mxu0 0.0
    %120 = vmatpush1.xpose.msra.mxu0 0.0
    %121 = vmatprep.subr.mxu0 0.0
    %122 = vmatpush1.xpose.msra.mxu0 0.0
    %123 = vmatprep.subr.mxu0 0.0
    %124 = vmatpush1.xpose.msra.mxu0 0.0
    %125 = vmatprep.mubr.f32.mxu0 0.0
    %126 = vmatmul.mubr.f32.gmra.mrb[0].mxu0 %v53
    %v127 = vpop.f32.mrb[0].mxu0
    %v128 = vadd.f32 %v49, %v127
    %v129 = vpop.f32.mrb[0].mxu0
    %130 = vdwg.mxu0
    %vm131 = vcmask 130048
    %132 = vst.msk [vmem:[#allocation7] sm:$0xff] %vm131, %v128
    // Predicated region
    $region22: #{tpu_custom_call.1} parent=1 // pred_check
      _
    $region23: #{tpu_custom_call.1} parent=1 // pred_check_branch
      %134 = sbr.rel (0) target = $region25
    $region24: #{tpu_custom_call.1} parent=1 // pred_region
      %s136 = ssub.s32 128, 128
      %137 = vsyncadd [#allocation4], %s136
      %s139 = sshll.u32 [#allocation7], 4
      %s140 = int_to_ptr.vmem [resolvable:$true] %s139
      %142 = dma.vmem_to_hbm [thread:$0]  %s140, 128, %s3, [#allocation4]
    $region25: #{tpu_custom_call.1} parent=1 // pred_fallthru
      _
    // Predicated region
    $region26: #{tpu_custom_call.1} parent=1 // pred_check
      _
    $region27: #{tpu_custom_call.1} parent=1 // pred_check_branch
      %144 = sbr.rel (0) target = $region29
    $region28: #{tpu_custom_call.1} parent=1 // pred_region
      %145 = dma.done [#allocation4], 128
    $region29: #{tpu_custom_call.1} parent=1 // pred_fallthru
      _
    %146 = vsyncpa [#allocation3], 1
    %147 = vsyncpa [#allocation6], 1
    %148 = vsyncpa [#allocation4], 1

</llo_original>
